<compile_context>
chip_gen: v6e
topology: v6e:2x2x1
jax: 0.10.0
libtpu: 0.0.40
codegen_flags: <defaults>
</compile_context>

<pallas_src>
import functools

import jax
import jax.numpy as jnp
from jax.experimental import pallas as pl
from jax.experimental.pallas import tpu as pltpu

BN_EPS = 1e-5
LANE = 128


def _round_up(n, m):
    return (n + m - 1) // m * m


def _decoder_kernel(num_hidden_layers, inv_batch,
                    x_ref, w_in_ref, w_hid_ref, gb_ref, w_out_ref, b_out_ref,
                    out_ref):
    """Fused (Linear -> BN(train) -> ReLU) x (1+L) -> Linear. All refs in VMEM."""

    def bn_relu(h, li):
        # BatchNorm1d, training mode: one-pass batch stats (biased variance).
        mean = jnp.sum(h, axis=0, keepdims=True) * inv_batch
        ex2 = jnp.sum(h * h, axis=0, keepdims=True) * inv_batch
        var = jnp.maximum(ex2 - mean * mean, 0.0)
        gb = gb_ref[li]                      # (2, hid_p) f32, static index
        gamma = gb[0:1, :]
        beta = gb[1:2, :]
        scale = gamma * jax.lax.rsqrt(var + BN_EPS)   # (1, hid_p) row math
        shift = beta - mean * scale                   # (1, hid_p) row math
        # Fused BN-affine + ReLU on the full tile: one FMA + one max.
        return jnp.maximum(h * scale + shift, 0.0)

    # Input layer. Linear bias omitted: exactly cancelled by BN mean subtract.
    h = jnp.dot(x_ref[...].astype(jnp.bfloat16), w_in_ref[...],
                preferred_element_type=jnp.float32)
    h = bn_relu(h, 0)

    # Hidden layers (stacked weights, static per-layer slices).
    for li in range(num_hidden_layers):
        h = jnp.dot(h.astype(jnp.bfloat16), w_hid_ref[li],
                    preferred_element_type=jnp.float32)
        h = bn_relu(h, li + 1)

    # Output Linear (bias kept: no BN after it).
    out = jnp.dot(h.astype(jnp.bfloat16), w_out_ref[...],
                  preferred_element_type=jnp.float32) + b_out_ref[...]
    out_ref[...] = out.astype(out_ref.dtype)


def prepare_params(params, num_hidden_layers):
    """One-time preparation (at init / on param update, NOT per forward):
    pad feature dims to 128 lanes, cast weights to bf16, stack per-layer params.
    Padding is exact: padded weight columns/rows are zero and padded gamma/beta
    are zero, so padded features stay identically 0 through Linear/BN/ReLU."""
    num_bn = 1 + num_hidden_layers
    in_f, hid_f = params["w_0"].shape
    out_f = params["w_out"].shape[1]
    in_p = _round_up(in_f, LANE)
    hid_p = _round_up(hid_f, LANE)
    out_p = _round_up(out_f, LANE)

    def pad_w(w, rows_p, cols_p):
        w = jnp.pad(w, ((0, rows_p - w.shape[0]), (0, cols_p - w.shape[1])))
        return w.astype(jnp.bfloat16)

    w_in = pad_w(params["w_0"], in_p, hid_p)
    if num_hidden_layers > 0:
        w_hid = jnp.stack([pad_w(params[f"w_{li + 1}"], hid_p, hid_p)
                           for li in range(num_hidden_layers)])
    else:  # dummy single block, never read by the kernel
        w_hid = jnp.zeros((1, hid_p, hid_p), jnp.bfloat16)

    # gamma/beta stacked: (num_bn, 2, hid_p) f32.
    gb = jnp.stack([
        jnp.stack([jnp.pad(params[f"gamma_{li}"][0], (0, hid_p - hid_f)),
                   jnp.pad(params[f"beta_{li}"][0], (0, hid_p - hid_f))])
        for li in range(num_bn)
    ]).astype(jnp.float32)

    w_out = pad_w(params["w_out"], hid_p, out_p)
    b_out = jnp.pad(params["b_out"],
                    ((0, 0), (0, out_p - out_f))).astype(jnp.float32)
    # b_0..b_L intentionally dropped: cancelled by train-mode BN mean-subtract.
    return dict(w_in=w_in, w_hid=w_hid, gb=gb, w_out=w_out, b_out=b_out,
                in_features=in_f, out_features=out_f)


@functools.partial(jax.jit, static_argnames=("num_hidden_layers",))
def decoder_forward(x, w_in, w_hid, gb, w_out, b_out, *, num_hidden_layers):
    """x: (batch, input_features) f32. Returns padded (batch, out_p) f32;
    the consumer slices [:, :out_features] if/when needed (kept out of the
    hot path per review)."""
    batch = x.shape[0]
    in_p = w_in.shape[0]
    out_p = w_out.shape[1]
    # Single cheap per-call pad of the activation input to a lane multiple
    # (parameters are pre-padded in prepare_params; batch is NOT padded —
    # BN stats must be over the true batch).
    x = jnp.pad(x, ((0, 0), (0, in_p - x.shape[1])))

    vmem = pl.BlockSpec(memory_space=pltpu.MemorySpace.VMEM)
    kernel = functools.partial(_decoder_kernel, num_hidden_layers, 1.0 / batch)
    return pl.pallas_call(
        kernel,
        out_shape=jax.ShapeDtypeStruct((batch, out_p), jnp.float32),
        in_specs=[vmem] * 6,
        out_specs=vmem,
    )(x, w_in, w_hid, gb, w_out, b_out)


def init_params(key, input_features, hidden_features, output_features,
                num_hidden_layers):
    """Deterministic init mimicking torch defaults (uniform(-1/sqrt(fan_in), .),
    BN gamma=1, beta=0). Linear weights stored pre-transposed as (in, out).
    Biases b_0..b_L are kept for the reference; the kernel never uses them."""
    params = {}
    dims_in = [input_features] + [hidden_features] * num_hidden_layers
    for li, fan_in in enumerate(dims_in):
        key, kw, kb = jax.random.split(key, 3)
        bound = 1.0 / jnp.sqrt(fan_in)
        params[f"w_{li}"] = jax.random.uniform(
            kw, (fan_in, hidden_features), jnp.float32, -bound, bound)
        params[f"b_{li}"] = jax.random.uniform(
            kb, (1, hidden_features), jnp.float32, -bound, bound)
        params[f"gamma_{li}"] = jnp.ones((1, hidden_features), jnp.float32)
        params[f"beta_{li}"] = jnp.zeros((1, hidden_features), jnp.float32)
    key, kw, kb = jax.random.split(key, 3)
    bound = 1.0 / jnp.sqrt(hidden_features)
    params["w_out"] = jax.random.uniform(
        kw, (hidden_features, output_features), jnp.float32, -bound, bound)
    params["b_out"] = jax.random.uniform(
        kb, (1, output_features), jnp.float32, -bound, bound)
    return params


def decoder_reference(x, params, num_hidden_layers):
    """Pure-JAX f32 reference matching torch semantics (Linear biases included,
    two-pass training-mode BN) for the correctness check."""
    h = x
    for li in range(1 + num_hidden_layers):
        h = h @ params[f"w_{li}"] + params[f"b_{li}"]
        mean = jnp.mean(h, axis=0, keepdims=True)
        var = jnp.mean((h - mean) ** 2, axis=0, keepdims=True)
        h = (h - mean) / jnp.sqrt(var + BN_EPS)
        h = h * params[f"gamma_{li}"] + params[f"beta_{li}"]
        h = jnp.maximum(h, 0.0)
    return h @ params["w_out"] + params["b_out"]


if __name__ == "__main__":
    input_features = 16
    hidden_features = 32
    output_features = 8
    num_hidden_layers = 2
    batch = 8

    key = jax.random.PRNGKey(0)
    key, kx = jax.random.split(key)
    x = jax.random.normal(kx, (batch, input_features), jnp.float32)
    params = init_params(key, input_features, hidden_features,
                         output_features, num_hidden_layers)

    # One-time: pad / cast / stack the parameters (outside the per-call path).
    prep = prepare_params(params, num_hidden_layers)
    prep = jax.tree_util.tree_map(
        jax.block_until_ready,
        {k: v for k, v in prep.items() if isinstance(v, jnp.ndarray)}) | {
        "out_features": prep["out_features"]}

    out_padded = decoder_forward(
        x, prep["w_in"], prep["w_hid"], prep["gb"], prep["w_out"], prep["b_out"],
        num_hidden_layers=num_hidden_layers)
    out_padded = jax.block_until_ready(out_padded)

    # Consumer-side slice (only for the correctness check).
    out = out_padded[:, :prep["out_features"]]
    ref = decoder_reference(x, params, num_hidden_layers)
    assert out.shape == (batch, output_features)
    # Tolerance sized for bf16 MXU operands (f32 accumulation, f32 BN math).
    assert jnp.allclose(out, ref, atol=5e-2, rtol=5e-2), "mismatch vs reference"

    print("KERNEL_OK")
</pallas_src>

<mosaic_0001>
module attributes {stable_mosaic.version = 11 : i64} {
  func.func @_decoder_kernel(%arg0: memref<8x128xf32, #tpu.memory_space<vmem>>, %arg1: memref<128x128xbf16, #tpu.memory_space<vmem>>, %arg2: memref<2x128x128xbf16, #tpu.memory_space<vmem>>, %arg3: memref<3x2x128xf32, #tpu.memory_space<vmem>>, %arg4: memref<128x128xbf16, #tpu.memory_space<vmem>>, %arg5: memref<1x128xf32, #tpu.memory_space<vmem>>, %arg6: memref<8x128xf32, #tpu.memory_space<vmem>>) attributes {dimension_semantics = [], scalar_prefetch = 0 : i64, scratch_operands = 0 : i64, tpu.core_type = #tpu.core_type<tc>} {
    %c0 = arith.constant 0 : index
    %c0_0 = arith.constant 0 : index
    %0 = vector.load %arg0[%c0, %c0_0] : memref<8x128xf32, #tpu.memory_space<vmem>>, vector<8x128xf32>
    %1 = arith.truncf %0 : vector<8x128xf32> to vector<8x128xbf16>
    %c0_1 = arith.constant 0 : index
    %c0_2 = arith.constant 0 : index
    %2 = vector.load %arg1[%c0_1, %c0_2] : memref<128x128xbf16, #tpu.memory_space<vmem>>, vector<128x128xbf16>
    %cst = arith.constant dense<0.000000e+00> : vector<8x128xf32>
    %3 = tpu.matmul %1, %2, %cst {dimension_numbers = #tpu.dot_dimension_numbers<[1], [0], [0], [1], [0, 0, 1, 1], [], []>} : vector<8x128xbf16>, vector<128x128xbf16>, vector<8x128xf32> -> vector<8x128xf32>
    %cst_3 = arith.constant dense<0.000000e+00> : vector<128xf32>
    %4 = vector.multi_reduction <add>, %3, %cst_3 [0] : vector<8x128xf32> to vector<128xf32>
    %5 = vector.shape_cast %4 : vector<128xf32> to vector<1x128xf32>
    %cst_4 = arith.constant 1.250000e-01 : f32
    %6 = vector.broadcast %cst_4 : f32 to vector<1x128xf32>
    %7 = arith.mulf %5, %6 : vector<1x128xf32>
    %8 = arith.mulf %3, %3 : vector<8x128xf32>
    %cst_5 = arith.constant dense<0.000000e+00> : vector<128xf32>
    %9 = vector.multi_reduction <add>, %8, %cst_5 [0] : vector<8x128xf32> to vector<128xf32>
    %10 = vector.shape_cast %9 : vector<128xf32> to vector<1x128xf32>
    %cst_6 = arith.constant 1.250000e-01 : f32
    %11 = vector.broadcast %cst_6 : f32 to vector<1x128xf32>
    %12 = arith.mulf %10, %11 : vector<1x128xf32>
    %13 = arith.mulf %7, %7 : vector<1x128xf32>
    %14 = arith.subf %12, %13 : vector<1x128xf32>
    %cst_7 = arith.constant 0.000000e+00 : f32
    %15 = vector.broadcast %cst_7 : f32 to vector<1x128xf32>
    %16 = arith.maximumf %14, %15 : vector<1x128xf32>
    %c0_8 = arith.constant 0 : index
    %c0_9 = arith.constant 0 : index
    %c0_10 = arith.constant 0 : index
    %17 = vector.load %arg3[%c0_8, %c0_9, %c0_10] : memref<3x2x128xf32, #tpu.memory_space<vmem>>, vector<1x2x128xf32>
    %18 = vector.shape_cast %17 : vector<1x2x128xf32> to vector<2x128xf32>
    %19 = vector.extract_strided_slice %18 {offsets = [0, 0], sizes = [1, 128], strides = [1, 1]} : vector<2x128xf32> to vector<1x128xf32>
    %20 = vector.extract_strided_slice %18 {offsets = [1, 0], sizes = [1, 128], strides = [1, 1]} : vector<2x128xf32> to vector<1x128xf32>
    %cst_11 = arith.constant 9.99999974E-6 : f32
    %21 = vector.broadcast %cst_11 : f32 to vector<1x128xf32>
    %22 = arith.addf %16, %21 : vector<1x128xf32>
    %23 = math.rsqrt %22 : vector<1x128xf32>
    %24 = arith.mulf %19, %23 : vector<1x128xf32>
    %25 = arith.mulf %7, %24 : vector<1x128xf32>
    %26 = arith.subf %20, %25 : vector<1x128xf32>
    %27 = vector.broadcast %24 : vector<1x128xf32> to vector<8x128xf32>
    %28 = arith.mulf %3, %27 : vector<8x128xf32>
    %29 = vector.broadcast %26 : vector<1x128xf32> to vector<8x128xf32>
    %30 = arith.addf %28, %29 : vector<8x128xf32>
    %cst_12 = arith.constant 0.000000e+00 : f32
    %31 = vector.broadcast %cst_12 : f32 to vector<8x128xf32>
    %32 = arith.maximumf %30, %31 : vector<8x128xf32>
    %33 = arith.truncf %32 : vector<8x128xf32> to vector<8x128xbf16>
    %c0_13 = arith.constant 0 : index
    %c0_14 = arith.constant 0 : index
    %c0_15 = arith.constant 0 : index
    %34 = vector.load %arg2[%c0_13, %c0_14, %c0_15] : memref<2x128x128xbf16, #tpu.memory_space<vmem>>, vector<1x128x128xbf16>
    %35 = vector.shape_cast %34 : vector<1x128x128xbf16> to vector<128x128xbf16>
    %cst_16 = arith.constant dense<0.000000e+00> : vector<8x128xf32>
    %36 = tpu.matmul %33, %35, %cst_16 {dimension_numbers = #tpu.dot_dimension_numbers<[1], [0], [0], [1], [0, 0, 1, 1], [], []>} : vector<8x128xbf16>, vector<128x128xbf16>, vector<8x128xf32> -> vector<8x128xf32>
    %cst_17 = arith.constant dense<0.000000e+00> : vector<128xf32>
    %37 = vector.multi_reduction <add>, %36, %cst_17 [0] : vector<8x128xf32> to vector<128xf32>
    %38 = vector.shape_cast %37 : vector<128xf32> to vector<1x128xf32>
    %cst_18 = arith.constant 1.250000e-01 : f32
    %39 = vector.broadcast %cst_18 : f32 to vector<1x128xf32>
    %40 = arith.mulf %38, %39 : vector<1x128xf32>
    %41 = arith.mulf %36, %36 : vector<8x128xf32>
    %cst_19 = arith.constant dense<0.000000e+00> : vector<128xf32>
    %42 = vector.multi_reduction <add>, %41, %cst_19 [0] : vector<8x128xf32> to vector<128xf32>
    %43 = vector.shape_cast %42 : vector<128xf32> to vector<1x128xf32>
    %cst_20 = arith.constant 1.250000e-01 : f32
    %44 = vector.broadcast %cst_20 : f32 to vector<1x128xf32>
    %45 = arith.mulf %43, %44 : vector<1x128xf32>
    %46 = arith.mulf %40, %40 : vector<1x128xf32>
    %47 = arith.subf %45, %46 : vector<1x128xf32>
    %cst_21 = arith.constant 0.000000e+00 : f32
    %48 = vector.broadcast %cst_21 : f32 to vector<1x128xf32>
    %49 = arith.maximumf %47, %48 : vector<1x128xf32>
    %c1 = arith.constant 1 : index
    %c0_22 = arith.constant 0 : index
    %c0_23 = arith.constant 0 : index
    %50 = vector.load %arg3[%c1, %c0_22, %c0_23] : memref<3x2x128xf32, #tpu.memory_space<vmem>>, vector<1x2x128xf32>
    %51 = vector.shape_cast %50 : vector<1x2x128xf32> to vector<2x128xf32>
    %52 = vector.extract_strided_slice %51 {offsets = [0, 0], sizes = [1, 128], strides = [1, 1]} : vector<2x128xf32> to vector<1x128xf32>
    %53 = vector.extract_strided_slice %51 {offsets = [1, 0], sizes = [1, 128], strides = [1, 1]} : vector<2x128xf32> to vector<1x128xf32>
    %cst_24 = arith.constant 9.99999974E-6 : f32
    %54 = vector.broadcast %cst_24 : f32 to vector<1x128xf32>
    %55 = arith.addf %49, %54 : vector<1x128xf32>
    %56 = math.rsqrt %55 : vector<1x128xf32>
    %57 = arith.mulf %52, %56 : vector<1x128xf32>
    %58 = arith.mulf %40, %57 : vector<1x128xf32>
    %59 = arith.subf %53, %58 : vector<1x128xf32>
    %60 = vector.broadcast %57 : vector<1x128xf32> to vector<8x128xf32>
    %61 = arith.mulf %36, %60 : vector<8x128xf32>
    %62 = vector.broadcast %59 : vector<1x128xf32> to vector<8x128xf32>
    %63 = arith.addf %61, %62 : vector<8x128xf32>
    %cst_25 = arith.constant 0.000000e+00 : f32
    %64 = vector.broadcast %cst_25 : f32 to vector<8x128xf32>
    %65 = arith.maximumf %63, %64 : vector<8x128xf32>
    %66 = arith.truncf %65 : vector<8x128xf32> to vector<8x128xbf16>
    %c1_26 = arith.constant 1 : index
    %c0_27 = arith.constant 0 : index
    %c0_28 = arith.constant 0 : index
    %67 = vector.load %arg2[%c1_26, %c0_27, %c0_28] : memref<2x128x128xbf16, #tpu.memory_space<vmem>>, vector<1x128x128xbf16>
    %68 = vector.shape_cast %67 : vector<1x128x128xbf16> to vector<128x128xbf16>
    %cst_29 = arith.constant dense<0.000000e+00> : vector<8x128xf32>
    %69 = tpu.matmul %66, %68, %cst_29 {dimension_numbers = #tpu.dot_dimension_numbers<[1], [0], [0], [1], [0, 0, 1, 1], [], []>} : vector<8x128xbf16>, vector<128x128xbf16>, vector<8x128xf32> -> vector<8x128xf32>
    %cst_30 = arith.constant dense<0.000000e+00> : vector<128xf32>
    %70 = vector.multi_reduction <add>, %69, %cst_30 [0] : vector<8x128xf32> to vector<128xf32>
    %71 = vector.shape_cast %70 : vector<128xf32> to vector<1x128xf32>
    %cst_31 = arith.constant 1.250000e-01 : f32
    %72 = vector.broadcast %cst_31 : f32 to vector<1x128xf32>
    %73 = arith.mulf %71, %72 : vector<1x128xf32>
    %74 = arith.mulf %69, %69 : vector<8x128xf32>
    %cst_32 = arith.constant dense<0.000000e+00> : vector<128xf32>
    %75 = vector.multi_reduction <add>, %74, %cst_32 [0] : vector<8x128xf32> to vector<128xf32>
    %76 = vector.shape_cast %75 : vector<128xf32> to vector<1x128xf32>
    %cst_33 = arith.constant 1.250000e-01 : f32
    %77 = vector.broadcast %cst_33 : f32 to vector<1x128xf32>
    %78 = arith.mulf %76, %77 : vector<1x128xf32>
    %79 = arith.mulf %73, %73 : vector<1x128xf32>
    %80 = arith.subf %78, %79 : vector<1x128xf32>
    %cst_34 = arith.constant 0.000000e+00 : f32
    %81 = vector.broadcast %cst_34 : f32 to vector<1x128xf32>
    %82 = arith.maximumf %80, %81 : vector<1x128xf32>
    %c2 = arith.constant 2 : index
    %c0_35 = arith.constant 0 : index
    %c0_36 = arith.constant 0 : index
    %83 = vector.load %arg3[%c2, %c0_35, %c0_36] : memref<3x2x128xf32, #tpu.memory_space<vmem>>, vector<1x2x128xf32>
    %84 = vector.shape_cast %83 : vector<1x2x128xf32> to vector<2x128xf32>
    %85 = vector.extract_strided_slice %84 {offsets = [0, 0], sizes = [1, 128], strides = [1, 1]} : vector<2x128xf32> to vector<1x128xf32>
    %86 = vector.extract_strided_slice %84 {offsets = [1, 0], sizes = [1, 128], strides = [1, 1]} : vector<2x128xf32> to vector<1x128xf32>
    %cst_37 = arith.constant 9.99999974E-6 : f32
    %87 = vector.broadcast %cst_37 : f32 to vector<1x128xf32>
    %88 = arith.addf %82, %87 : vector<1x128xf32>
    %89 = math.rsqrt %88 : vector<1x128xf32>
    %90 = arith.mulf %85, %89 : vector<1x128xf32>
    %91 = arith.mulf %73, %90 : vector<1x128xf32>
    %92 = arith.subf %86, %91 : vector<1x128xf32>
    %93 = vector.broadcast %90 : vector<1x128xf32> to vector<8x128xf32>
    %94 = arith.mulf %69, %93 : vector<8x128xf32>
    %95 = vector.broadcast %92 : vector<1x128xf32> to vector<8x128xf32>
    %96 = arith.addf %94, %95 : vector<8x128xf32>
    %cst_38 = arith.constant 0.000000e+00 : f32
    %97 = vector.broadcast %cst_38 : f32 to vector<8x128xf32>
    %98 = arith.maximumf %96, %97 : vector<8x128xf32>
    %99 = arith.truncf %98 : vector<8x128xf32> to vector<8x128xbf16>
    %c0_39 = arith.constant 0 : index
    %c0_40 = arith.constant 0 : index
    %100 = vector.load %arg4[%c0_39, %c0_40] : memref<128x128xbf16, #tpu.memory_space<vmem>>, vector<128x128xbf16>
    %cst_41 = arith.constant dense<0.000000e+00> : vector<8x128xf32>
    %101 = tpu.matmul %99, %100, %cst_41 {dimension_numbers = #tpu.dot_dimension_numbers<[1], [0], [0], [1], [0, 0, 1, 1], [], []>} : vector<8x128xbf16>, vector<128x128xbf16>, vector<8x128xf32> -> vector<8x128xf32>
    %c0_42 = arith.constant 0 : index
    %c0_43 = arith.constant 0 : index
    %102 = vector.load %arg5[%c0_42, %c0_43] : memref<1x128xf32, #tpu.memory_space<vmem>>, vector<1x128xf32>
    %103 = vector.broadcast %102 : vector<1x128xf32> to vector<8x128xf32>
    %104 = arith.addf %101, %103 : vector<8x128xf32>
    %c0_44 = arith.constant 0 : index
    %c0_45 = arith.constant 0 : index
    %105 = vector.load %arg6[%c0_44, %c0_45] : memref<8x128xf32, #tpu.memory_space<vmem>>, vector<8x128xf32>
    tpu.vector_store %arg6[%c0_44, %c0_45], %104 {strides = array<i32>} : memref<8x128xf32, #tpu.memory_space<vmem>>, vector<8x128xf32>,
    return
  }
}

</mosaic_0001>

<llo_original>
// kernel: decoder_forward.1
$region0: #{decoder_forward.1}
  #allocation0 [shape = 'u32[]', space=smem, size = 0x4, offset = 0x4, fixed_abs, tag = 'smem constant byte address 0x4 - core index']
  #allocation1 [shape = 'u32[144,128]{1,0:T(1,128)}', space=vmem, size = 0x12000, scoped, tag = 'internal scratch']
  %s0 = inlined_call_operand.vmem [shape: f32[8,128], index: 0, kind: input, shape index: {}]
  %s1 = inlined_call_operand.hbm [shape: bf16[128,128], index: 1, kind: input, shape index: {}]
  %s2 = inlined_call_operand.hbm [shape: bf16[2,128,128], index: 2, kind: input, shape index: {}]
  %s3 = inlined_call_operand.vmem [shape: f32[3,2,128], index: 3, kind: input, shape index: {}]
  %s4 = inlined_call_operand.hbm [shape: bf16[128,128], index: 4, kind: input, shape index: {}]
  %s5 = inlined_call_operand.vmem [shape: f32[1,128], index: 5, kind: input, shape index: {}]
  %s6 = inlined_call_operand.hbm [shape: f32[8,128], index: 6, kind: output, shape index: {}]
  %s7 = sld [smem:[#allocation0]]
  $region46: #{decoder_forward.1} parent=0
    _
  %s9 = ssub.s32 1, %s7
  %s10 = scalar_select 0, %s9, %s7
  $region1: #{decoder_forward.1} parent=0
    #allocation2 [shape = 'u8[32768]{0}', space=vmem, size = 0x8000, scoped, tag = 'input window, operand 1, single buffered']
    #allocation3 [shape = 's32[1]{0}', space=sflag, size = 0x4, scoped, tag = 'scoped memory for decoder_forward.1']
    #allocation4 [shape = 's32[1]{0}', space=sflag, size = 0x4, scoped, tag = 'scoped memory for decoder_forward.1']
    #allocation5 [shape = 'u8[65536]{0}', space=vmem, size = 0x10000, scoped, tag = 'input window, operand 2, single buffered']
    #allocation6 [shape = 's32[1]{0}', space=sflag, size = 0x4, scoped, tag = 'scoped memory for decoder_forward.1']
    #allocation7 [shape = 'u8[32768]{0}', space=vmem, size = 0x8000, scoped, tag = 'input window, operand 4, single buffered']
    #allocation8 [shape = 'u8[4096]{0}', space=vmem, size = 0x1000, scoped, tag = 'output window, operand 0, single buffered']
    %11 = vsyncpa [#allocation3], 0
    %12 = vsyncpa [#allocation6], 0
    %13 = vsyncpa [#allocation4], 0
    // Predicated region
    $region2: #{decoder_forward.1} parent=1 // pred_check
      _
    $region3: #{decoder_forward.1} parent=1 // pred_check_branch
      %15 = sbr.rel (0) target = $region5
    $region4: #{decoder_forward.1} parent=1 // pred_region
      _
    $region5: #{decoder_forward.1} parent=1 // pred_fallthru
      _
    // Predicated region
    $region6: #{decoder_forward.1} parent=1 // pred_check
      _
    $region7: #{decoder_forward.1} parent=1 // pred_check_branch
      %17 = sbr.rel (0) target = $region9
    $region8: #{decoder_forward.1} parent=1 // pred_region
      %s19 = ssub.s32 1024, 1024
      %20 = vsyncadd [#allocation3], %s19
      %s21 = sshll.u32 [#allocation2], 4
      %s22 = int_to_ptr.vmem [resolvable:$true] %s21
      %27 = dma.hbm_to_vmem [thread:$0]  %s1, 1024, %s22, [#allocation3], 64, 64, 4
    $region9: #{decoder_forward.1} parent=1 // pred_fallthru
      _
    // Predicated region
    $region10: #{decoder_forward.1} parent=1 // pred_check
      _
    $region11: #{decoder_forward.1} parent=1 // pred_check_branch
      %29 = sbr.rel (0) target = $region13
    $region12: #{decoder_forward.1} parent=1 // pred_region
      %s31 = ssub.s32 2048, 2048
      %32 = vsyncadd [#allocation6], %s31
      %s33 = sshll.u32 [#allocation5], 4
      %s34 = int_to_ptr.vmem [resolvable:$true] %s33
      %39 = dma.hbm_to_vmem [thread:$0]  %s2, 2048, %s34, [#allocation6], 64, 64, 4
    $region13: #{decoder_forward.1} parent=1 // pred_fallthru
      _
    // Predicated region
    $region14: #{decoder_forward.1} parent=1 // pred_check
      _
    $region15: #{decoder_forward.1} parent=1 // pred_check_branch
      %41 = sbr.rel (0) target = $region17
    $region16: #{decoder_forward.1} parent=1 // pred_region
      _
    $region17: #{decoder_forward.1} parent=1 // pred_fallthru
      _
    // Predicated region
    $region18: #{decoder_forward.1} parent=1 // pred_check
      _
    $region19: #{decoder_forward.1} parent=1 // pred_check_branch
      %43 = sbr.rel (0) target = $region21
    $region20: #{decoder_forward.1} parent=1 // pred_region
      %s45 = ssub.s32 1024, 1024
      %46 = vsyncadd [#allocation6], %s45
      %s47 = sshll.u32 [#allocation7], 4
      %s48 = int_to_ptr.vmem [resolvable:$true] %s47
      %53 = dma.hbm_to_vmem [thread:$0]  %s4, 1024, %s48, [#allocation6], 64, 64, 4
    $region21: #{decoder_forward.1} parent=1 // pred_fallthru
      _
    // Predicated region
    $region22: #{decoder_forward.1} parent=1 // pred_check
      _
    $region23: #{decoder_forward.1} parent=1 // pred_check_branch
      %55 = sbr.rel (0) target = $region25
    $region24: #{decoder_forward.1} parent=1 // pred_region
      _
    $region25: #{decoder_forward.1} parent=1 // pred_fallthru
      _
    // Predicated region
    $region26: #{decoder_forward.1} parent=1 // pred_check
      _
    $region27: #{decoder_forward.1} parent=1 // pred_check_branch
      %57 = sbr.rel (0) target = $region29
    $region28: #{decoder_forward.1} parent=1 // pred_region
      %58 = dma.done [#allocation3], 1024
    $region29: #{decoder_forward.1} parent=1 // pred_fallthru
      _
    // Predicated region
    $region30: #{decoder_forward.1} parent=1 // pred_check
      _
    $region31: #{decoder_forward.1} parent=1 // pred_check_branch
      %60 = sbr.rel (0) target = $region33
    $region32: #{decoder_forward.1} parent=1 // pred_region
      %61 = dma.done [#allocation6], 2048
    $region33: #{decoder_forward.1} parent=1 // pred_fallthru
      _
    // Predicated region
    $region34: #{decoder_forward.1} parent=1 // pred_check
      _
    $region35: #{decoder_forward.1} parent=1 // pred_check_branch
      %63 = sbr.rel (0) target = $region37
    $region36: #{decoder_forward.1} parent=1 // pred_region
      %64 = dma.done [#allocation6], 1024
    $region37: #{decoder_forward.1} parent=1 // pred_fallthru
      _
    %v66 = vld [vmem:[%s0] sm:$0xff]
    %v67 = vpack.c.bf16 %v66, %v66
    %v68 = vld [vmem:[#allocation2] sm:$0xf]
    %v69 = vld [vmem:[#allocation2 + $0x4] sm:$0xf]
    %v70 = vld [vmem:[#allocation2 + $0x8] sm:$0xf]
    %v71 = vld [vmem:[#allocation2 + $0xc] sm:$0xf]
    %v72 = vld [vmem:[#allocation2 + $0x10] sm:$0xf]
    %v73 = vld [vmem:[#allocation2 + $0x14] sm:$0xf]
    %v74 = vld [vmem:[#allocation2 + $0x18] sm:$0xf]
    %v75 = vld [vmem:[#allocation2 + $0x1c] sm:$0xf]
    %v76 = vld [vmem:[#allocation2 + $0x20] sm:$0xf]
    %v77 = vld [vmem:[#allocation2 + $0x24] sm:$0xf]
    %v78 = vld [vmem:[#allocation2 + $0x28] sm:$0xf]
    %v79 = vld [vmem:[#allocation2 + $0x2c] sm:$0xf]
    %v80 = vld [vmem:[#allocation2 + $0x30] sm:$0xf]
    %v81 = vld [vmem:[#allocation2 + $0x34] sm:$0xf]
    %v82 = vld [vmem:[#allocation2 + $0x38] sm:$0xf]
    %v83 = vld [vmem:[#allocation2 + $0x3c] sm:$0xf]
    %v100 = vunpack.c.l.b16 %v68
    %v101 = vunpack.c.l.b16 %v69
    %v102 = vunpack.c.l.b16 %v70
    %v103 = vunpack.c.l.b16 %v71
    %v104 = vunpack.c.l.b16 %v72
    %v105 = vunpack.c.l.b16 %v73
    %v106 = vunpack.c.l.b16 %v74
    %v107 = vunpack.c.l.b16 %v75
    %v108 = vunpack.c.l.b16 %v76
    %v109 = vunpack.c.l.b16 %v77
    %v110 = vunpack.c.l.b16 %v78
    %v111 = vunpack.c.l.b16 %v79
    %v112 = vunpack.c.l.b16 %v80
    %v113 = vunpack.c.l.b16 %v81
    %v114 = vunpack.c.l.b16 %v82
    %v115 = vunpack.c.l.b16 %v83
    %v116 = vpack.c.b16 %v101, %v100
    %v117 = vpack.c.b16 %v103, %v102
    %v118 = vpack.c.b16 %v105, %v104
    %v119 = vpack.c.b16 %v107, %v106
    %v120 = vpack.c.b16 %v109, %v108
    %v121 = vpack.c.b16 %v111, %v110
    %v122 = vpack.c.b16 %v113, %v112
    %v123 = vpack.c.b16 %v115, %v114
    %132 = vmatprep.subr.bf16.mxu0 0
    %133 = vmatpush1.bf16.msra.mxu0 %v123
    %134 = vmatprep.subr.bf16.mxu0 0
    %135 = vmatpush1.bf16.msra.mxu0 %v122
    %136 = vmatprep.subr.bf16.mxu0 0
    %137 = vmatpush1.bf16.msra.mxu0 %v121
    %138 = vmatprep.subr.bf16.mxu0 0
    %139 = vmatpush1.bf16.msra.mxu0 %v120
    %140 = vmatprep.subr.bf16.mxu0 0
    %141 = vmatpush1.bf16.msra.mxu0 %v119
    %142 = vmatprep.subr.bf16.mxu0 0
    %143 = vmatpush1.bf16.msra.mxu0 %v118
    %144 = vmatprep.subr.bf16.mxu0 0
    %145 = vmatpush1.bf16.msra.mxu0 %v117
    %146 = vmatprep.subr.bf16.mxu0 0
    %147 = vmatpush1.bf16.msra.mxu0 %v116
    %148 = vmatprep.subr.bf16.mxu0 0
    %149 = vmatpush2.bf16.msra.mxu0 0
    %150 = vmatprep.subr.bf16.mxu0 0
    %151 = vmatpush2.bf16.msra.mxu0 0
    %152 = vmatprep.subr.bf16.mxu0 0
    %153 = vmatpush2.bf16.msra.mxu0 0
    %154 = vmatprep.subr.bf16.mxu0 0
    %155 = vmatpush2.bf16.msra.mxu0 0
    %156 = vmatprep.subr.bf16.mxu0 0
    %157 = vmatpush2.bf16.msra.mxu0 0
    %158 = vmatprep.subr.bf16.mxu0 0
    %159 = vmatpush2.bf16.msra.mxu0 0
    %160 = vmatprep.subr.bf16.mxu0 0
    %161 = vmatpush2.bf16.msra.mxu0 0
    %162 = vmatprep.subr.bf16.mxu0 0
    %163 = vmatpush2.bf16.msra.mxu0 0
    %164 = vmatprep.mubr.bf16.mxu0 0
    %165 = vmatmul.mubr.bf16.gmra.mxu0 %v67
    %v166 = vpop.f32.mrf.mxu0
    %v167 = vadd.f32 0.0, %v166
    %v168 = vpop.f32.mrf.mxu0
    %v169 = vpop.f32.mrf.mxu0
    %v170 = vpop.f32.mrf.mxu0
    %171 = vdwg.mxu0
    %v172 = vrot.slane %v167, 4
    %v173 = vadd.f32 %v167, %v172
    %v174 = vrot.slane %v173, 2
    %v175 = vadd.f32 %v173, %v174
    %v176 = vrot.slane %v175, 1
    %v177 = vadd.f32 %v175, %v176
    %v178 = vmul.f32 %v177, 0.125
    %v179 = vmul.f32 %v167, %v167
    %v180 = vrot.slane %v179, 4
    %v181 = vadd.f32 %v179, %v180
    %v182 = vrot.slane %v181, 2
    %v183 = vadd.f32 %v181, %v182
    %v184 = vrot.slane %v183, 1
    %v185 = vadd.f32 %v183, %v184
    %v186 = vmul.f32 %v185, 0.125
    %v187 = vmul.f32 %v178, %v178
    %v188 = vsub.f32 %v186, %v187
    %v189 = vmax.f32 %v188, 0.0
    %v190 = vld [vmem:[%s3] sm:$0x3]
    %v191 = vadd.f32 %v189, 1e-05
    %v192 = vrsqrt.pop %v191
    %v193 = vmul.f32 %v190, %v192
    %v194 = vmul.f32 %v178, %v193
    %v196 = vrot.slane %v194, 7
    %v198 = vsub.f32 %v190, %v196
    %v199 = vlaneseq
    %v200 = vshrl.u32 %v199, 7
    %v201 = vsub.s32 0, %v200
    %v202 = vrot.slane %v193, %v201
    %v203 = vmul.f32 %v167, %v202
    %v204 = vlaneseq
    %v205 = vshrl.u32 %v204, 7
    %v206 = vsub.s32 1, %v205
    %v207 = vrot.slane %v198, %v206
    %v208 = vadd.f32 %v203, %v207
    %v209 = vmax.f32 %v208, 0.0
    %v210 = vpack.c.bf16 %v209, %v209
    %v211 = vld [vmem:[#allocation5] sm:$0xf]
    %v212 = vld [vmem:[#allocation5 + $0x4] sm:$0xf]
    %v213 = vld [vmem:[#allocation5 + $0x8] sm:$0xf]
    %v214 = vld [vmem:[#allocation5 + $0xc] sm:$0xf]
    %v215 = vld [vmem:[#allocation5 + $0x10] sm:$0xf]
    %v216 = vld [vmem:[#allocation5 + $0x14] sm:$0xf]
    %v217 = vld [vmem:[#allocation5 + $0x18] sm:$0xf]
    %v218 = vld [vmem:[#allocation5 + $0x1c] sm:$0xf]
    %v219 = vld [vmem:[#allocation5 + $0x20] sm:$0xf]
    %v220 = vld [vmem:[#allocation5 + $0x24] sm:$0xf]
    %v221 = vld [vmem:[#allocation5 + $0x28] sm:$0xf]
    %v222 = vld [vmem:[#allocation5 + $0x2c] sm:$0xf]
    %v223 = vld [vmem:[#allocation5 + $0x30] sm:$0xf]
    %v224 = vld [vmem:[#allocation5 + $0x34] sm:$0xf]
    %v225 = vld [vmem:[#allocation5 + $0x38] sm:$0xf]
    %v226 = vld [vmem:[#allocation5 + $0x3c] sm:$0xf]
    %v243 = vunpack.c.l.b16 %v211
    %v244 = vunpack.c.l.b16 %v212
    %v245 = vunpack.c.l.b16 %v213
    %v246 = vunpack.c.l.b16 %v214
    %v247 = vunpack.c.l.b16 %v215
    %v248 = vunpack.c.l.b16 %v216
    %v249 = vunpack.c.l.b16 %v217
    %v250 = vunpack.c.l.b16 %v218
    %v251 = vunpack.c.l.b16 %v219
    %v252 = vunpack.c.l.b16 %v220
    %v253 = vunpack.c.l.b16 %v221
    %v254 = vunpack.c.l.b16 %v222
    %v255 = vunpack.c.l.b16 %v223
    %v256 = vunpack.c.l.b16 %v224
    %v257 = vunpack.c.l.b16 %v225
    %v258 = vunpack.c.l.b16 %v226
    %v259 = vpack.c.b16 %v244, %v243
    %v260 = vpack.c.b16 %v246, %v245
    %v261 = vpack.c.b16 %v248, %v247
    %v262 = vpack.c.b16 %v250, %v249
    %v263 = vpack.c.b16 %v252, %v251
    %v264 = vpack.c.b16 %v254, %v253
    %v265 = vpack.c.b16 %v256, %v255
    %v266 = vpack.c.b16 %v258, %v257
    %275 = vmatprep.subr.bf16.mxu0 0
    %276 = vmatpush1.bf16.msra.mxu0 %v266
    %277 = vmatprep.subr.bf16.mxu0 0
    %278 = vmatpush1.bf16.msra.mxu0 %v265
    %279 = vmatprep.subr.bf16.mxu0 0
    %280 = vmatpush1.bf16.msra.mxu0 %v264
    %281 = vmatprep.subr.bf16.mxu0 0
    %282 = vmatpush1.bf16.msra.mxu0 %v263
    %283 = vmatprep.subr.bf16.mxu0 0
    %284 = vmatpush1.bf16.msra.mxu0 %v262
    %285 = vmatprep.subr.bf16.mxu0 0
    %286 = vmatpush1.bf16.msra.mxu0 %v261
    %287 = vmatprep.subr.bf16.mxu0 0
    %288 = vmatpush1.bf16.msra.mxu0 %v260
    %289 = vmatprep.subr.bf16.mxu0 0
    %290 = vmatpush1.bf16.msra.mxu0 %v259
    %291 = vmatprep.subr.bf16.mxu0 0
    %292 = vmatpush2.bf16.msra.mxu0 0
    %293 = vmatprep.subr.bf16.mxu0 0
    %294 = vmatpush2.bf16.msra.mxu0 0
    %295 = vmatprep.subr.bf16.mxu0 0
    %296 = vmatpush2.bf16.msra.mxu0 0
    %297 = vmatprep.subr.bf16.mxu0 0
    %298 = vmatpush2.bf16.msra.mxu0 0
    %299 = vmatprep.subr.bf16.mxu0 0
    %300 = vmatpush2.bf16.msra.mxu0 0
    %301 = vmatprep.subr.bf16.mxu0 0
    %302 = vmatpush2.bf16.msra.mxu0 0
    %303 = vmatprep.subr.bf16.mxu0 0
    %304 = vmatpush2.bf16.msra.mxu0 0
    %305 = vmatprep.subr.bf16.mxu0 0
    %306 = vmatpush2.bf16.msra.mxu0 0
    %307 = vmatprep.mubr.bf16.mxu0 0
    %308 = vmatmul.mubr.bf16.gmra.mxu0 %v210
    %v309 = vpop.f32.mrf.mxu0
    %v310 = vadd.f32 0.0, %v309
    %v311 = vpop.f32.mrf.mxu0
    %v312 = vpop.f32.mrf.mxu0
    %v313 = vpop.f32.mrf.mxu0
    %314 = vdwg.mxu0
    %v315 = vrot.slane %v310, 4
    %v316 = vadd.f32 %v310, %v315
    %v317 = vrot.slane %v316, 2
    %v318 = vadd.f32 %v316, %v317
    %v319 = vrot.slane %v318, 1
    %v320 = vadd.f32 %v318, %v319
    %v321 = vmul.f32 %v320, 0.125
    %v322 = vmul.f32 %v310, %v310
    %v323 = vrot.slane %v322, 4
    %v324 = vadd.f32 %v322, %v323
    %v325 = vrot.slane %v324, 2
    %v326 = vadd.f32 %v324, %v325
    %v327 = vrot.slane %v326, 1
    %v328 = vadd.f32 %v326, %v327
    %v329 = vmul.f32 %v328, 0.125
    %v330 = vmul.f32 %v321, %v321
    %v331 = vsub.f32 %v329, %v330
    %v332 = vmax.f32 %v331, 0.0
    %s333 = scalar_lea.vmem %s3, 2
    %v334 = vld [vmem:[%s333] sm:$0x3]
    %v335 = vadd.f32 %v332, 1e-05
    %v336 = vrsqrt.pop %v335
    %v337 = vmul.f32 %v334, %v336
    %v338 = vmul.f32 %v321, %v337
    %v340 = vrot.slane %v338, 7
    %v342 = vsub.f32 %v334, %v340
    %v343 = vlaneseq
    %v344 = vshrl.u32 %v343, 7
    %v345 = vsub.s32 0, %v344
    %v346 = vrot.slane %v337, %v345
    %v347 = vmul.f32 %v310, %v346
    %v348 = vlaneseq
    %v349 = vshrl.u32 %v348, 7
    %v350 = vsub.s32 1, %v349
    %v351 = vrot.slane %v342, %v350
    %v352 = vadd.f32 %v347, %v351
    %v353 = vmax.f32 %v352, 0.0
    %v354 = vpack.c.bf16 %v353, %v353
    %s355 = scalar_lea.vmem [#allocation5], 64
    %v356 = vld [vmem:[%s355] sm:$0xf]
    %v357 = vld [vmem:[%s355 + $0x4] sm:$0xf]
    %v358 = vld [vmem:[%s355 + $0x8] sm:$0xf]
    %v359 = vld [vmem:[%s355 + $0xc] sm:$0xf]
    %v360 = vld [vmem:[%s355 + $0x10] sm:$0xf]
    %v361 = vld [vmem:[%s355 + $0x14] sm:$0xf]
    %v362 = vld [vmem:[%s355 + $0x18] sm:$0xf]
    %v363 = vld [vmem:[%s355 + $0x1c] sm:$0xf]
    %v364 = vld [vmem:[%s355 + $0x20] sm:$0xf]
    %v365 = vld [vmem:[%s355 + $0x24] sm:$0xf]
    %v366 = vld [vmem:[%s355 + $0x28] sm:$0xf]
    %v367 = vld [vmem:[%s355 + $0x2c] sm:$0xf]
    %v368 = vld [vmem:[%s355 + $0x30] sm:$0xf]
    %v369 = vld [vmem:[%s355 + $0x34] sm:$0xf]
    %v370 = vld [vmem:[%s355 + $0x38] sm:$0xf]
    %v371 = vld [vmem:[%s355 + $0x3c] sm:$0xf]
    %v388 = vunpack.c.l.b16 %v356
    %v389 = vunpack.c.l.b16 %v357
    %v390 = vunpack.c.l.b16 %v358
    %v391 = vunpack.c.l.b16 %v359
    %v392 = vunpack.c.l.b16 %v360
    %v393 = vunpack.c.l.b16 %v361
    %v394 = vunpack.c.l.b16 %v362
    %v395 = vunpack.c.l.b16 %v363
    %v396 = vunpack.c.l.b16 %v364
    %v397 = vunpack.c.l.b16 %v365
    %v398 = vunpack.c.l.b16 %v366
    %v399 = vunpack.c.l.b16 %v367
    %v400 = vunpack.c.l.b16 %v368
    %v401 = vunpack.c.l.b16 %v369
    %v402 = vunpack.c.l.b16 %v370
    %v403 = vunpack.c.l.b16 %v371
    %v404 = vpack.c.b16 %v389, %v388
    %v405 = vpack.c.b16 %v391, %v390
    %v406 = vpack.c.b16 %v393, %v392
    %v407 = vpack.c.b16 %v395, %v394
    %v408 = vpack.c.b16 %v397, %v396
    %v409 = vpack.c.b16 %v399, %v398
    %v410 = vpack.c.b16 %v401, %v400
    %v411 = vpack.c.b16 %v403, %v402
    %420 = vmatprep.subr.bf16.mxu0 0
    %421 = vmatpush1.bf16.msra.mxu0 %v411
    %422 = vmatprep.subr.bf16.mxu0 0
    %423 = vmatpush1.bf16.msra.mxu0 %v410
    %424 = vmatprep.subr.bf16.mxu0 0
    %425 = vmatpush1.bf16.msra.mxu0 %v409
    %426 = vmatprep.subr.bf16.mxu0 0
    %427 = vmatpush1.bf16.msra.mxu0 %v408
    %428 = vmatprep.subr.bf16.mxu0 0
    %429 = vmatpush1.bf16.msra.mxu0 %v407
    %430 = vmatprep.subr.bf16.mxu0 0
    %431 = vmatpush1.bf16.msra.mxu0 %v406
    %432 = vmatprep.subr.bf16.mxu0 0
    %433 = vmatpush1.bf16.msra.mxu0 %v405
    %434 = vmatprep.subr.bf16.mxu0 0
    %435 = vmatpush1.bf16.msra.mxu0 %v404
    %436 = vmatprep.subr.bf16.mxu0 0
    %437 = vmatpush2.bf16.msra.mxu0 0
    %438 = vmatprep.subr.bf16.mxu0 0
    %439 = vmatpush2.bf16.msra.mxu0 0
    %440 = vmatprep.subr.bf16.mxu0 0
    %441 = vmatpush2.bf16.msra.mxu0 0
    %442 = vmatprep.subr.bf16.mxu0 0
    %443 = vmatpush2.bf16.msra.mxu0 0
    %444 = vmatprep.subr.bf16.mxu0 0
    %445 = vmatpush2.bf16.msra.mxu0 0
    %446 = vmatprep.subr.bf16.mxu0 0
    %447 = vmatpush2.bf16.msra.mxu0 0
    %448 = vmatprep.subr.bf16.mxu0 0
    %449 = vmatpush2.bf16.msra.mxu0 0
    %450 = vmatprep.subr.bf16.mxu0 0
    %451 = vmatpush2.bf16.msra.mxu0 0
    %452 = vmatprep.mubr.bf16.mxu0 0
    %453 = vmatmul.mubr.bf16.gmra.mxu0 %v354
    %v454 = vpop.f32.mrf.mxu0
    %v455 = vadd.f32 0.0, %v454
    %v456 = vpop.f32.mrf.mxu0
    %v457 = vpop.f32.mrf.mxu0
    %v458 = vpop.f32.mrf.mxu0
    %459 = vdwg.mxu0
    %v460 = vrot.slane %v455, 4
    %v461 = vadd.f32 %v455, %v460
    %v462 = vrot.slane %v461, 2
    %v463 = vadd.f32 %v461, %v462
    %v464 = vrot.slane %v463, 1
    %v465 = vadd.f32 %v463, %v464
    %v466 = vmul.f32 %v465, 0.125
    %v467 = vmul.f32 %v455, %v455
    %v468 = vrot.slane %v467, 4
    %v469 = vadd.f32 %v467, %v468
    %v470 = vrot.slane %v469, 2
    %v471 = vadd.f32 %v469, %v470
    %v472 = vrot.slane %v471, 1
    %v473 = vadd.f32 %v471, %v472
    %v474 = vmul.f32 %v473, 0.125
    %v475 = vmul.f32 %v466, %v466
    %v476 = vsub.f32 %v474, %v475
    %v477 = vmax.f32 %v476, 0.0
    %s478 = scalar_lea.vmem %s3, 4
    %v479 = vld [vmem:[%s478] sm:$0x3]
    %v480 = vadd.f32 %v477, 1e-05
    %v481 = vrsqrt.pop %v480
    %v482 = vmul.f32 %v479, %v481
    %v483 = vmul.f32 %v466, %v482
    %v485 = vrot.slane %v483, 7
    %v487 = vsub.f32 %v479, %v485
    %v488 = vlaneseq
    %v489 = vshrl.u32 %v488, 7
    %v490 = vsub.s32 0, %v489
    %v491 = vrot.slane %v482, %v490
    %v492 = vmul.f32 %v455, %v491
    %v493 = vlaneseq
    %v494 = vshrl.u32 %v493, 7
    %v495 = vsub.s32 1, %v494
    %v496 = vrot.slane %v487, %v495
    %v497 = vadd.f32 %v492, %v496
    %v498 = vmax.f32 %v497, 0.0
    %v499 = vpack.c.bf16 %v498, %v498
    %v500 = vld [vmem:[#allocation7] sm:$0xf]
    %v501 = vld [vmem:[#allocation7 + $0x4] sm:$0xf]
    %v502 = vld [vmem:[#allocation7 + $0x8] sm:$0xf]
    %v503 = vld [vmem:[#allocation7 + $0xc] sm:$0xf]
    %v504 = vld [vmem:[#allocation7 + $0x10] sm:$0xf]
    %v505 = vld [vmem:[#allocation7 + $0x14] sm:$0xf]
    %v506 = vld [vmem:[#allocation7 + $0x18] sm:$0xf]
    %v507 = vld [vmem:[#allocation7 + $0x1c] sm:$0xf]
    %v508 = vld [vmem:[#allocation7 + $0x20] sm:$0xf]
    %v509 = vld [vmem:[#allocation7 + $0x24] sm:$0xf]
    %v510 = vld [vmem:[#allocation7 + $0x28] sm:$0xf]
    %v511 = vld [vmem:[#allocation7 + $0x2c] sm:$0xf]
    %v512 = vld [vmem:[#allocation7 + $0x30] sm:$0xf]
    %v513 = vld [vmem:[#allocation7 + $0x34] sm:$0xf]
    %v514 = vld [vmem:[#allocation7 + $0x38] sm:$0xf]
    %v515 = vld [vmem:[#allocation7 + $0x3c] sm:$0xf]
    %v516 = vld [vmem:[%s5] sm:$0x1]
    %v518 = vlaneseq
    %v519 = vshrl.u32 %v518, 7
    %v520 = vsub.s32 0, %v519
    %v521 = vrot.slane %v516, %v520
    %v539 = vunpack.c.l.b16 %v500
    %v540 = vunpack.c.l.b16 %v501
    %v541 = vunpack.c.l.b16 %v502
    %v542 = vunpack.c.l.b16 %v503
    %v543 = vunpack.c.l.b16 %v504
    %v544 = vunpack.c.l.b16 %v505
    %v545 = vunpack.c.l.b16 %v506
    %v546 = vunpack.c.l.b16 %v507
    %v547 = vunpack.c.l.b16 %v508
    %v548 = vunpack.c.l.b16 %v509
    %v549 = vunpack.c.l.b16 %v510
    %v550 = vunpack.c.l.b16 %v511
    %v551 = vunpack.c.l.b16 %v512
    %v552 = vunpack.c.l.b16 %v513
    %v553 = vunpack.c.l.b16 %v514
    %v554 = vunpack.c.l.b16 %v515
    %v555 = vpack.c.b16 %v540, %v539
    %v556 = vpack.c.b16 %v542, %v541
    %v557 = vpack.c.b16 %v544, %v543
    %v558 = vpack.c.b16 %v546, %v545
    %v559 = vpack.c.b16 %v548, %v547
    %v560 = vpack.c.b16 %v550, %v549
    %v561 = vpack.c.b16 %v552, %v551
    %v562 = vpack.c.b16 %v554, %v553
    %571 = vmatprep.subr.bf16.mxu0 0
    %572 = vmatpush1.bf16.msra.mxu0 %v562
    %573 = vmatprep.subr.bf16.mxu0 0
    %574 = vmatpush1.bf16.msra.mxu0 %v561
    %575 = vmatprep.subr.bf16.mxu0 0
    %576 = vmatpush1.bf16.msra.mxu0 %v560
    %577 = vmatprep.subr.bf16.mxu0 0
    %578 = vmatpush1.bf16.msra.mxu0 %v559
    %579 = vmatprep.subr.bf16.mxu0 0
    %580 = vmatpush1.bf16.msra.mxu0 %v558
    %581 = vmatprep.subr.bf16.mxu0 0
    %582 = vmatpush1.bf16.msra.mxu0 %v557
    %583 = vmatprep.subr.bf16.mxu0 0
    %584 = vmatpush1.bf16.msra.mxu0 %v556
    %585 = vmatprep.subr.bf16.mxu0 0
    %586 = vmatpush1.bf16.msra.mxu0 %v555
    %587 = vmatprep.subr.bf16.mxu0 0
    %588 = vmatpush2.bf16.msra.mxu0 0
    %589 = vmatprep.subr.bf16.mxu0 0
    %590 = vmatpush2.bf16.msra.mxu0 0
    %591 = vmatprep.subr.bf16.mxu0 0
    %592 = vmatpush2.bf16.msra.mxu0 0
    %593 = vmatprep.subr.bf16.mxu0 0
    %594 = vmatpush2.bf16.msra.mxu0 0
    %595 = vmatprep.subr.bf16.mxu0 0
    %596 = vmatpush2.bf16.msra.mxu0 0
    %597 = vmatprep.subr.bf16.mxu0 0
    %598 = vmatpush2.bf16.msra.mxu0 0
    %599 = vmatprep.subr.bf16.mxu0 0
    %600 = vmatpush2.bf16.msra.mxu0 0
    %601 = vmatprep.subr.bf16.mxu0 0
    %602 = vmatpush2.bf16.msra.mxu0 0
    %603 = vmatprep.mubr.bf16.mxu0 0
    %604 = vmatmul.mubr.bf16.gmra.mxu0 %v499
    %v605 = vpop.f32.mrf.mxu0
    %v606 = vadd.f32 %v521, %v605
    %v607 = vpop.f32.mrf.mxu0
    %v608 = vpop.f32.mrf.mxu0
    %v609 = vpop.f32.mrf.mxu0
    %610 = vdwg.mxu0
    %611 = vst [vmem:[#allocation8] sm:$0xff] %v606
    // Predicated region
    $region38: #{decoder_forward.1} parent=1 // pred_check
      _
    $region39: #{decoder_forward.1} parent=1 // pred_check_branch
      %613 = sbr.rel (0) target = $region41
    $region40: #{decoder_forward.1} parent=1 // pred_region
      %s615 = ssub.s32 128, 128
      %616 = vsyncadd [#allocation4], %s615
      %s618 = sshll.u32 [#allocation8], 4
      %s619 = int_to_ptr.vmem [resolvable:$true] %s618
      %621 = dma.vmem_to_hbm [thread:$0]  %s619, 128, %s6, [#allocation4]
    $region41: #{decoder_forward.1} parent=1 // pred_fallthru
      _
    // Predicated region
    $region42: #{decoder_forward.1} parent=1 // pred_check
      _
    $region43: #{decoder_forward.1} parent=1 // pred_check_branch
      %623 = sbr.rel (0) target = $region45
    $region44: #{decoder_forward.1} parent=1 // pred_region
      %624 = dma.done [#allocation4], 128
    $region45: #{decoder_forward.1} parent=1 // pred_fallthru
      _
    %625 = vsyncpa [#allocation3], 1
    %626 = vsyncpa [#allocation6], 1
    %627 = vsyncpa [#allocation4], 1

</llo_original>
